<compile_context>
chip_gen: v7x
topology: tpu7x:2x2x1
jax: 0.10.0
libtpu: 0.0.40
codegen_flags: <defaults>
</compile_context>

<pallas_src>
import jax
import jax.numpy as jnp
from jax.experimental import pallas as pl
from jax.experimental.pallas import tpu as pltpu


# ---------------------------------------------------------------------------
# Kernel: whole forward pass on one batch tile (weights fully VMEM-resident).
# ---------------------------------------------------------------------------
def blob_kernel(alpha_ref, x_ref, w1_ref, b1_ref, w2_ref, b2_ref, w3_ref, b3_ref,
                o_ref):
    a = alpha_ref[0, 0]                      # shared PReLU slope (SMEM scalar)

    def prelu(v):
        # max(v,0) + a*min(v,0): pure VPU, no select-mask materialization.
        return jnp.maximum(v, 0.0) + a * jnp.minimum(v, 0.0)

    def lin(v, w_ref, b_ref):
        return jnp.dot(v, w_ref[...], preferred_element_type=jnp.float32) + b_ref[...]

    x = x_ref[...].astype(jnp.float32)       # x.type(torch.float)
    h = prelu(lin(x, w1_ref, b1_ref))        # (TB, 128)  == [x1|x2|x3| 0-pad]
    z = prelu(lin(h, w2_ref, b2_ref))        # (TB, 384)  == [z1|z2|z3]
    o_ref[...] = lin(z, w3_ref, b3_ref)      # (TB, out)  narrow, lane-sparse store
    # NOTE: if profiling ever shows this kernel MXU-bound, cast h/z/W2/W3 to
    # bfloat16 for matmuls 2-3 (keep preferred_element_type=f32).


# ---------------------------------------------------------------------------
# Parameter packing: collapse 7 Linear layers into 3 fused weight/bias pairs.
# ---------------------------------------------------------------------------
def _round_up(n, m):
    return ((n + m - 1) // m) * m


def _pad_cols(a, n):
    return a if a.shape[1] == n else jnp.pad(a, ((0, 0), (0, n - a.shape[1])))


def _pad_rows(a, n):
    return a if a.shape[0] == n else jnp.pad(a, ((0, n - a.shape[0]), (0, 0)))


def pack_params(params):
    (alpha, w11, b11, w12, b12, w13, b13,
     w21, b21, w22, b22, w23, b23, w3, b3) = params
    H = w11.shape[1]
    n4 = w21.shape[1]                                   # 4H

    # Layer 1: [x1|x2|x3] = prelu(x @ W1 + b1); pad 3H -> multiple of 128 so the
    # hidden activation is lane-dense and matmul-2's K is MXU-aligned.
    W1 = jnp.concatenate([w11, w12, w13], axis=1)       # (in, 3H)
    b1 = jnp.concatenate([b11, b12, b13], axis=1)       # (1, 3H)
    h_dim = max(128, _round_up(3 * H, 128))
    W1 = _pad_cols(W1, h_dim)
    b1 = _pad_cols(b1, h_dim)

    # Layer 2: with h = [x1|x2|x3],
    #   z1 = x1 @ w21[:H] + x2 @ w21[H:]     (y1 = [x1, x2])
    #   z2 = x2 @ w22[:H] + x3 @ w22[H:]     (y2 = [x2, x3])
    #   z3 = x3 @ w23[:H] + x1 @ w23[H:]     (y3 = [x3, x1])
    zero = jnp.zeros((H, n4), w21.dtype)
    W2 = jnp.concatenate([
        jnp.concatenate([w21[:H], w21[H:], zero], axis=0),   # -> z1 columns
        jnp.concatenate([zero, w22[:H], w22[H:]], axis=0),   # -> z2 columns
        jnp.concatenate([w23[H:], zero, w23[:H]], axis=0),   # -> z3 columns
    ], axis=1)                                               # (3H, 12H)
    b2 = jnp.concatenate([b21, b22, b23], axis=1)            # (1, 12H)
    z_dim = max(128, _round_up(3 * n4, 128))
    W2 = _pad_cols(_pad_rows(W2, h_dim), z_dim)              # (h_dim, z_dim)
    b2 = _pad_cols(b2, z_dim)

    # Layer 3: pad contraction rows to z_dim; keep the tiny out dim as-is
    # (block last dim == full array dim is legal, and keeps output HBM bytes
    # 32x smaller than lane-padding to 128).
    W3 = _pad_rows(w3, z_dim)                                # (z_dim, out)
    alpha2 = alpha.reshape(1, 1).astype(jnp.float32)
    return alpha2, W1, b1, W2, b2, W3, b3


def _pick_tile(B, tb):
    if tb is None:
        tb = 2048                                  # sweep 2048-4096 if desired
        # v7x megacore: keep >= 2 grid steps so both TensorCores get batch work.
        tb = min(tb, max(8, _round_up((B + 1) // 2, 8)))
    tb = max(8, _round_up(tb, 8))
    return min(tb, _round_up(B, 8))


# ---------------------------------------------------------------------------
# Wrapper: batch grid (parallel), weights broadcast to every tile.
# ---------------------------------------------------------------------------
def blob_forward(x, params, *, tb=None):
    alpha, W1, b1, W2, b2, W3, b3 = pack_params(params)
    B, in_size = x.shape
    out_size = W3.shape[1]

    tb = _pick_tile(B, tb)
    B_pad = _round_up(B, tb)
    if B_pad != B:
        x = jnp.pad(x, ((0, B_pad - B), (0, 0)))

    grid = (B_pad // tb,)
    full = lambda arr: pl.BlockSpec(arr.shape, lambda i: (0, 0))

    out = pl.pallas_call(
        blob_kernel,
        out_shape=jax.ShapeDtypeStruct((B_pad, out_size), jnp.float32),
        grid=grid,
        in_specs=[
            pl.BlockSpec(memory_space=pltpu.MemorySpace.SMEM),      # alpha
            pl.BlockSpec((tb, in_size), lambda i: (i, 0)),          # x tile
            full(W1), full(b1),
            full(W2), full(b2),
            full(W3), full(b3),
        ],
        out_specs=pl.BlockSpec((tb, out_size), lambda i: (i, 0)),
        compiler_params=pltpu.CompilerParams(
            dimension_semantics=("parallel",),
            vmem_limit_bytes=32 * 1024 * 1024),
    )(alpha, x, W1, b1, W2, b2, W3, b3)

    return out if B_pad == B else out[:B]


# ---------------------------------------------------------------------------
# Deterministic synthetic params (PyTorch-style init, transposed layout).
# ---------------------------------------------------------------------------
def init_params(key, input_size, output_size, hidden):
    def linear(k, fin, fout):
        kw, kb = jax.random.split(k)
        bound = 1.0 / jnp.sqrt(fin)
        w = jax.random.uniform(kw, (fin, fout), jnp.float32, -bound, bound)
        b = jax.random.uniform(kb, (1, fout), jnp.float32, -bound, bound)
        return w, b

    ks = jax.random.split(key, 7)
    w11, b11 = linear(ks[0], input_size, hidden)
    w12, b12 = linear(ks[1], input_size, hidden)
    w13, b13 = linear(ks[2], input_size, hidden)
    w21, b21 = linear(ks[3], hidden * 2, hidden * 4)
    w22, b22 = linear(ks[4], hidden * 2, hidden * 4)
    w23, b23 = linear(ks[5], hidden * 2, hidden * 4)
    w3, b3 = linear(ks[6], hidden * 12, output_size)
    alpha = jnp.full((1, 1), 0.25, jnp.float32)   # nn.PReLU() default init
    return (alpha, w11, b11, w12, b12, w13, b13,
            w21, b21, w22, b22, w23, b23, w3, b3)


# ---------------------------------------------------------------------------
# Pure-JAX unfused reference (mirrors the PyTorch forward exactly).
# ---------------------------------------------------------------------------
def reference_forward(x, params):
    (alpha, w11, b11, w12, b12, w13, b13,
     w21, b21, w22, b22, w23, b23, w3, b3) = params
    a = alpha[0, 0]
    prelu = lambda v: jnp.where(v >= 0, v, a * v)
    xf = x.astype(jnp.float32)
    x1 = prelu(xf @ w11 + b11)
    x2 = prelu(xf @ w12 + b12)
    x3 = prelu(xf @ w13 + b13)
    z1 = prelu(jnp.concatenate([x1, x2], 1) @ w21 + b21)
    z2 = prelu(jnp.concatenate([x2, x3], 1) @ w22 + b22)
    z3 = prelu(jnp.concatenate([x3, x1], 1) @ w23 + b23)
    return jnp.concatenate([z1, z2, z3], 1) @ w3 + b3


if __name__ == "__main__":
    INPUT_SIZE, OUTPUT_SIZE, HIDDEN = 4, 4, 32

    key = jax.random.PRNGKey(0)
    kx, kp, kx2, kx3 = jax.random.split(key, 4)
    params = init_params(kp, INPUT_SIZE, OUTPUT_SIZE, HIDDEN)

    # Case 1: small batch, single grid step (tile auto-capped to 8).
    x = jax.random.normal(kx, (8, INPUT_SIZE), jnp.float32)
    out = jax.block_until_ready(blob_forward(x, params))
    ref = jax.block_until_ready(reference_forward(x, params))
    assert out.shape == (8, OUTPUT_SIZE)
    assert jnp.allclose(out, ref, atol=1e-4, rtol=1e-4)

    # Case 2: non-multiple batch with explicit small tile -> multi-step grid
    # exercising batch padding + the parallel batch axis.
    x2 = jax.random.normal(kx2, (20, INPUT_SIZE), jnp.float32)
    out2 = jax.block_until_ready(blob_forward(x2, params, tb=8))
    ref2 = jax.block_until_ready(reference_forward(x2, params))
    assert out2.shape == (20, OUTPUT_SIZE)
    assert jnp.allclose(out2, ref2, atol=1e-4, rtol=1e-4)

    # Case 3: larger ragged batch with the default (2048-row) tile -> exercises
    # the multi-step pipelined path used in production-sized batches.
    x3 = jax.random.normal(kx3, (4109, INPUT_SIZE), jnp.float32)
    out3 = jax.block_until_ready(blob_forward(x3, params))
    ref3 = jax.block_until_ready(reference_forward(x3, params))
    assert out3.shape == (4109, OUTPUT_SIZE)
    assert jnp.allclose(out3, ref3, atol=1e-4, rtol=1e-4)

    print("KERNEL_OK")
</pallas_src>

<mosaic_0001>
module attributes {stable_mosaic.version = 11 : i64} {
  func.func @blob_kernel(%arg0: i32, %arg1: memref<1x1xf32, #tpu.memory_space<smem>>, %arg2: memref<8x4xf32, #tpu.memory_space<vmem>>, %arg3: memref<4x128xf32, #tpu.memory_space<vmem>>, %arg4: memref<1x128xf32, #tpu.memory_space<vmem>>, %arg5: memref<128x384xf32, #tpu.memory_space<vmem>>, %arg6: memref<1x384xf32, #tpu.memory_space<vmem>>, %arg7: memref<384x4xf32, #tpu.memory_space<vmem>>, %arg8: memref<1x4xf32, #tpu.memory_space<vmem>>, %arg9: memref<8x4xf32, #tpu.memory_space<vmem>>) attributes {dimension_semantics = [#tpu.dimension_semantics<parallel>], iteration_bounds = array<i64: 1>, scalar_prefetch = 0 : i64, scratch_operands = 0 : i64, tpu.core_type = #tpu.core_type<tc>, window_params = [{transform_indices = @transform_0, window_bounds = array<i64: 1, 1>}, {transform_indices = @transform_1, window_bounds = array<i64: 8, 4>}, {pipeline_mode = #tpu.pipeline_mode<synchronous>, transform_indices = @transform_2, window_bounds = array<i64: 4, 128>}, {pipeline_mode = #tpu.pipeline_mode<synchronous>, transform_indices = @transform_3, window_bounds = array<i64: 1, 128>}, {pipeline_mode = #tpu.pipeline_mode<synchronous>, transform_indices = @transform_4, window_bounds = array<i64: 128, 384>}, {pipeline_mode = #tpu.pipeline_mode<synchronous>, transform_indices = @transform_5, window_bounds = array<i64: 1, 384>}, {pipeline_mode = #tpu.pipeline_mode<synchronous>, transform_indices = @transform_6, window_bounds = array<i64: 384, 4>}, {pipeline_mode = #tpu.pipeline_mode<synchronous>, transform_indices = @transform_7, window_bounds = array<i64: 1, 4>}, {transform_indices = @transform_8, window_bounds = array<i64: 8, 4>}]} {
    %c0 = arith.constant 0 : index
    %c0_0 = arith.constant 0 : index
    %0 = memref.load %arg1[%c0, %c0_0] : memref<1x1xf32, #tpu.memory_space<smem>>
    %c0_1 = arith.constant 0 : index
    %c0_2 = arith.constant 0 : index
    %1 = vector.load %arg2[%c0_1, %c0_2] : memref<8x4xf32, #tpu.memory_space<vmem>>, vector<8x4xf32>
    %c0_3 = arith.constant 0 : index
    %c0_4 = arith.constant 0 : index
    %2 = vector.load %arg3[%c0_3, %c0_4] : memref<4x128xf32, #tpu.memory_space<vmem>>, vector<4x128xf32>
    %cst = arith.constant dense<0.000000e+00> : vector<8x128xf32>
    %3 = tpu.matmul %1, %2, %cst {dimension_numbers = #tpu.dot_dimension_numbers<[1], [0], [0], [1], [0, 0, 1, 1], [], []>} : vector<8x4xf32>, vector<4x128xf32>, vector<8x128xf32> -> vector<8x128xf32>
    %c0_5 = arith.constant 0 : index
    %c0_6 = arith.constant 0 : index
    %4 = vector.load %arg4[%c0_5, %c0_6] : memref<1x128xf32, #tpu.memory_space<vmem>>, vector<1x128xf32>
    %5 = vector.broadcast %4 : vector<1x128xf32> to vector<8x128xf32>
    %6 = arith.addf %3, %5 : vector<8x128xf32>
    %cst_7 = arith.constant 0.000000e+00 : f32
    %7 = vector.broadcast %cst_7 : f32 to vector<8x128xf32>
    %8 = arith.maximumf %6, %7 : vector<8x128xf32>
    %cst_8 = arith.constant 0.000000e+00 : f32
    %9 = vector.broadcast %cst_8 : f32 to vector<8x128xf32>
    %10 = arith.minimumf %6, %9 : vector<8x128xf32>
    %11 = vector.broadcast %0 : f32 to vector<8x128xf32>
    %12 = arith.mulf %11, %10 : vector<8x128xf32>
    %13 = arith.addf %8, %12 : vector<8x128xf32>
    %c0_9 = arith.constant 0 : index
    %c0_10 = arith.constant 0 : index
    %14 = vector.load %arg5[%c0_9, %c0_10] : memref<128x384xf32, #tpu.memory_space<vmem>>, vector<128x384xf32>
    %cst_11 = arith.constant dense<0.000000e+00> : vector<8x384xf32>
    %15 = tpu.matmul %13, %14, %cst_11 {dimension_numbers = #tpu.dot_dimension_numbers<[1], [0], [0], [1], [0, 0, 1, 1], [], []>} : vector<8x128xf32>, vector<128x384xf32>, vector<8x384xf32> -> vector<8x384xf32>
    %c0_12 = arith.constant 0 : index
    %c0_13 = arith.constant 0 : index
    %16 = vector.load %arg6[%c0_12, %c0_13] : memref<1x384xf32, #tpu.memory_space<vmem>>, vector<1x384xf32>
    %17 = vector.broadcast %16 : vector<1x384xf32> to vector<8x384xf32>
    %18 = arith.addf %15, %17 : vector<8x384xf32>
    %cst_14 = arith.constant 0.000000e+00 : f32
    %19 = vector.broadcast %cst_14 : f32 to vector<8x384xf32>
    %20 = arith.maximumf %18, %19 : vector<8x384xf32>
    %cst_15 = arith.constant 0.000000e+00 : f32
    %21 = vector.broadcast %cst_15 : f32 to vector<8x384xf32>
    %22 = arith.minimumf %18, %21 : vector<8x384xf32>
    %23 = vector.broadcast %0 : f32 to vector<8x384xf32>
    %24 = arith.mulf %23, %22 : vector<8x384xf32>
    %25 = arith.addf %20, %24 : vector<8x384xf32>
    %c0_16 = arith.constant 0 : index
    %c0_17 = arith.constant 0 : index
    %26 = vector.load %arg7[%c0_16, %c0_17] : memref<384x4xf32, #tpu.memory_space<vmem>>, vector<384x4xf32>
    %cst_18 = arith.constant dense<0.000000e+00> : vector<8x4xf32>
    %27 = tpu.matmul %25, %26, %cst_18 {dimension_numbers = #tpu.dot_dimension_numbers<[1], [0], [0], [1], [0, 0, 1, 1], [], []>} : vector<8x384xf32>, vector<384x4xf32>, vector<8x4xf32> -> vector<8x4xf32>
    %c0_19 = arith.constant 0 : index
    %c0_20 = arith.constant 0 : index
    %28 = vector.load %arg8[%c0_19, %c0_20] : memref<1x4xf32, #tpu.memory_space<vmem>>, vector<1x4xf32>
    %29 = vector.broadcast %28 : vector<1x4xf32> to vector<8x4xf32>
    %30 = arith.addf %27, %29 : vector<8x4xf32>
    %c0_21 = arith.constant 0 : index
    %c0_22 = arith.constant 0 : index
    %31 = vector.load %arg9[%c0_21, %c0_22] : memref<8x4xf32, #tpu.memory_space<vmem>>, vector<8x4xf32>
    tpu.vector_store %arg9[%c0_21, %c0_22], %30 {strides = array<i32>} : memref<8x4xf32, #tpu.memory_space<vmem>>, vector<8x4xf32>,
    return
  }
  func.func @transform_0(%arg0: i32) -> (i32, i32) {
    %c0_i32 = arith.constant 0 : i32
    %c0_i32_0 = arith.constant 0 : i32
    %c0_i32_1 = arith.constant 0 : i32
    return %c0_i32, %c0_i32_0 : i32, i32
  }
  func.func @transform_1(%arg0: i32) -> (i32, i32) {
    %c0_i32 = arith.constant 0 : i32
    %c0_i32_0 = arith.constant 0 : i32
    return %arg0, %c0_i32 : i32, i32
  }
  func.func @transform_2(%arg0: i32) -> (i32, i32) {
    %c0_i32 = arith.constant 0 : i32
    %c0_i32_0 = arith.constant 0 : i32
    %c0_i32_1 = arith.constant 0 : i32
    return %c0_i32, %c0_i32_0 : i32, i32
  }
  func.func @transform_3(%arg0: i32) -> (i32, i32) {
    %c0_i32 = arith.constant 0 : i32
    %c0_i32_0 = arith.constant 0 : i32
    %c0_i32_1 = arith.constant 0 : i32
    return %c0_i32, %c0_i32_0 : i32, i32
  }
  func.func @transform_4(%arg0: i32) -> (i32, i32) {
    %c0_i32 = arith.constant 0 : i32
    %c0_i32_0 = arith.constant 0 : i32
    %c0_i32_1 = arith.constant 0 : i32
    return %c0_i32, %c0_i32_0 : i32, i32
  }
  func.func @transform_5(%arg0: i32) -> (i32, i32) {
    %c0_i32 = arith.constant 0 : i32
    %c0_i32_0 = arith.constant 0 : i32
    %c0_i32_1 = arith.constant 0 : i32
    return %c0_i32, %c0_i32_0 : i32, i32
  }
  func.func @transform_6(%arg0: i32) -> (i32, i32) {
    %c0_i32 = arith.constant 0 : i32
    %c0_i32_0 = arith.constant 0 : i32
    %c0_i32_1 = arith.constant 0 : i32
    return %c0_i32, %c0_i32_0 : i32, i32
  }
  func.func @transform_7(%arg0: i32) -> (i32, i32) {
    %c0_i32 = arith.constant 0 : i32
    %c0_i32_0 = arith.constant 0 : i32
    %c0_i32_1 = arith.constant 0 : i32
    return %c0_i32, %c0_i32_0 : i32, i32
  }
  func.func @transform_8(%arg0: i32) -> (i32, i32) {
    %c0_i32 = arith.constant 0 : i32
    %c0_i32_0 = arith.constant 0 : i32
    return %arg0, %c0_i32 : i32, i32
  }
}

</mosaic_0001>

<llo_original>
// kernel: tpu_custom_call.1
$region0: #{tpu_custom_call.1}
  #allocation0 [shape = 'u32[]', space=smem, size = 0x4, offset = 0x4, fixed_abs, tag = 'smem constant byte address 0x4 - core index']
  #allocation1 [shape = 'u32[144,128]{1,0:T(1,128)}', space=vmem, size = 0x12000, scoped, tag = 'internal scratch']
  #allocation2 [shape = 'f32[1,1]{1,0:T(1,128)S(6)}', space=smem, size = 0x200, scoped, tag = 'scoped memory for tpu_custom_call.1']
  %s0 = inlined_call_operand.<no memory space> [shape: f32[1,1], index: 0, kind: input, shape index: {}]
  %s1 = inlined_call_operand.vmem [shape: f32[8,4], index: 1, kind: input, shape index: {}]
  %s2 = inlined_call_operand.vmem [shape: f32[4,128], index: 2, kind: input, shape index: {}]
  %s3 = inlined_call_operand.vmem [shape: f32[1,128], index: 3, kind: input, shape index: {}]
  %s4 = inlined_call_operand.vmem [shape: f32[128,384], index: 4, kind: input, shape index: {}]
  %s5 = inlined_call_operand.vmem [shape: f32[1,384], index: 5, kind: input, shape index: {}]
  %s6 = inlined_call_operand.vmem [shape: f32[384,4], index: 6, kind: input, shape index: {}]
  %s7 = inlined_call_operand.vmem [shape: f32[1,4], index: 7, kind: input, shape index: {}]
  %s8 = inlined_call_operand.vmem [shape: f32[8,4], index: 8, kind: output, shape index: {}]
  %s9 = sld [smem:[#allocation0]]
  $region42: #{tpu_custom_call.1} parent=0
    _
  %s11 = ssub.s32 1, %s9
  %s12 = scalar_select 0, %s11, %s9
  %13 = sst [smem:[#allocation2]] %s0
  // Predicated region
  $region2: #{tpu_custom_call.1} parent=0 // pred_check
    _
  $region3: #{tpu_custom_call.1} parent=0 // pred_check_branch
    %15 = sbr.rel (0) target = $region5
  $region4: #{tpu_custom_call.1} parent=0 // pred_region
    _
  $region5: #{tpu_custom_call.1} parent=0 // pred_fallthru
    _
  // Predicated region
  $region6: #{tpu_custom_call.1} parent=0 // pred_check
    _
  $region7: #{tpu_custom_call.1} parent=0 // pred_check_branch
    %17 = sbr.rel (0) target = $region9
  $region8: #{tpu_custom_call.1} parent=0 // pred_region
    _
  $region9: #{tpu_custom_call.1} parent=0 // pred_fallthru
    _
  // Predicated region
  $region10: #{tpu_custom_call.1} parent=0 // pred_check
    _
  $region11: #{tpu_custom_call.1} parent=0 // pred_check_branch
    %19 = sbr.rel (0) target = $region13
  $region12: #{tpu_custom_call.1} parent=0 // pred_region
    _
  $region13: #{tpu_custom_call.1} parent=0 // pred_fallthru
    _
  // Predicated region
  $region14: #{tpu_custom_call.1} parent=0 // pred_check
    _
  $region15: #{tpu_custom_call.1} parent=0 // pred_check_branch
    %21 = sbr.rel (0) target = $region17
  $region16: #{tpu_custom_call.1} parent=0 // pred_region
    _
  $region17: #{tpu_custom_call.1} parent=0 // pred_fallthru
    _
  // Predicated region
  $region18: #{tpu_custom_call.1} parent=0 // pred_check
    _
  $region19: #{tpu_custom_call.1} parent=0 // pred_check_branch
    %23 = sbr.rel (0) target = $region21
  $region20: #{tpu_custom_call.1} parent=0 // pred_region
    _
  $region21: #{tpu_custom_call.1} parent=0 // pred_fallthru
    _
  // Predicated region
  $region22: #{tpu_custom_call.1} parent=0 // pred_check
    _
  $region23: #{tpu_custom_call.1} parent=0 // pred_check_branch
    %25 = sbr.rel (0) target = $region25
  $region24: #{tpu_custom_call.1} parent=0 // pred_region
    _
  $region25: #{tpu_custom_call.1} parent=0 // pred_fallthru
    _
  // Predicated region
  $region26: #{tpu_custom_call.1} parent=0 // pred_check
    _
  $region27: #{tpu_custom_call.1} parent=0 // pred_check_branch
    %27 = sbr.rel (0) target = $region29
  $region28: #{tpu_custom_call.1} parent=0 // pred_region
    _
  $region29: #{tpu_custom_call.1} parent=0 // pred_fallthru
    _
  // Predicated region
  $region30: #{tpu_custom_call.1} parent=0 // pred_check
    _
  $region31: #{tpu_custom_call.1} parent=0 // pred_check_branch
    %29 = sbr.rel (0) target = $region33
  $region32: #{tpu_custom_call.1} parent=0 // pred_region
    _
  $region33: #{tpu_custom_call.1} parent=0 // pred_fallthru
    _
  %s30 = sld [smem:[#allocation2]]
  %v31 = vld [vmem:[%s1] sm:$0xff]
  %v32 = vld [vmem:[%s2] sm:$0xf]
  %v33 = vld [vmem:[%s3] sm:$0x1]
  %v35 = vlaneseq
  %v36 = vshrl.u32 %v35, 7
  %v37 = vsub.s32 0, %v36
  %v38 = vrot.slane %v33, %v37
  %vm40 = vcmask 31744
  %v42 = vsel %vm40, %v31, 0
  %vm44 = vcmask 1043456
  %v46 = vsel %vm44, %v32, 0
  %48 = vmatprep.subr.mxu0 0.0
  %49 = vmatpush1.msra.mxu0 %v46
  %50 = vmatprep.subr.mxu0 0.0
  %51 = vmatpush1.msra.mxu0 0.0
  %52 = vmatprep.subr.mxu0 0.0
  %53 = vmatpush1.msra.mxu0 0.0
  %54 = vmatprep.subr.mxu0 0.0
  %55 = vmatpush1.msra.mxu0 0.0
  %56 = vmatprep.subr.mxu0 0.0
  %57 = vmatpush1.msra.mxu0 0.0
  %58 = vmatprep.subr.mxu0 0.0
  %59 = vmatpush1.msra.mxu0 0.0
  %60 = vmatprep.subr.mxu0 0.0
  %61 = vmatpush1.msra.mxu0 0.0
  %62 = vmatprep.subr.mxu0 0.0
  %63 = vmatpush1.msra.mxu0 0.0
  %64 = vmatprep.subr.mxu0 0.0
  %65 = vmatpush1.msra.mxu0 0.0
  %66 = vmatprep.subr.mxu0 0.0
  %67 = vmatpush1.msra.mxu0 0.0
  %68 = vmatprep.subr.mxu0 0.0
  %69 = vmatpush1.msra.mxu0 0.0
  %70 = vmatprep.subr.mxu0 0.0
  %71 = vmatpush1.msra.mxu0 0.0
  %72 = vmatprep.subr.mxu0 0.0
  %73 = vmatpush1.msra.mxu0 0.0
  %74 = vmatprep.subr.mxu0 0.0
  %75 = vmatpush1.msra.mxu0 0.0
  %76 = vmatprep.subr.mxu0 0.0
  %77 = vmatpush1.msra.mxu0 0.0
  %78 = vmatprep.subr.mxu0 0.0
  %79 = vmatpush1.msra.mxu0 0.0
  %80 = vmatprep.subr.mxu0 0.0
  %81 = vmatpush1.msra.mxu0 0.0
  %82 = vmatprep.subr.mxu0 0.0
  %83 = vmatpush1.msra.mxu0 0.0
  %84 = vmatprep.subr.mxu0 0.0
  %85 = vmatpush1.msra.mxu0 0.0
  %86 = vmatprep.subr.mxu0 0.0
  %87 = vmatpush1.msra.mxu0 0.0
  %88 = vmatprep.subr.mxu0 0.0
  %89 = vmatpush1.msra.mxu0 0.0
  %90 = vmatprep.subr.mxu0 0.0
  %91 = vmatpush1.msra.mxu0 0.0
  %92 = vmatprep.subr.mxu0 0.0
  %93 = vmatpush1.msra.mxu0 0.0
  %94 = vmatprep.subr.mxu0 0.0
  %95 = vmatpush1.msra.mxu0 0.0
  %96 = vmatprep.subr.mxu0 0.0
  %97 = vmatpush1.msra.mxu0 0.0
  %98 = vmatprep.subr.mxu0 0.0
  %99 = vmatpush1.msra.mxu0 0.0
  %100 = vmatprep.subr.mxu0 0.0
  %101 = vmatpush1.msra.mxu0 0.0
  %102 = vmatprep.subr.mxu0 0.0
  %103 = vmatpush1.msra.mxu0 0.0
  %104 = vmatprep.subr.mxu0 0.0
  %105 = vmatpush1.msra.mxu0 0.0
  %106 = vmatprep.subr.mxu0 0.0
  %107 = vmatpush1.msra.mxu0 0.0
  %108 = vmatprep.subr.mxu0 0.0
  %109 = vmatpush1.msra.mxu0 0.0
  %110 = vmatprep.subr.mxu0 0.0
  %111 = vmatpush1.msra.mxu0 0.0
  %112 = vmatprep.mubr.f32.mxu0 0.0
  %113 = vmatmul.mubr.f32.gmra.mrb[0].mxu0 %v42
  %v114 = vpop.f32.mrb[0].mxu0
  %v115 = vadd.f32 %v38, %v114
  %v116 = vpop.f32.mrb[0].mxu0
  %117 = vdwg.mxu0
  %v118 = vmax.f32 %v115, 0.0
  %v119 = vmin.f32 %v115, 0.0
  %v120 = vstv %s30
  %v121 = vmul.f32 %v120, %v119
  %v122 = vadd.f32 %v118, %v121
  %v123 = vld [vmem:[%s4] sm:$0xff]
  %v124 = vld [vmem:[%s4 + $0x8] sm:$0xff]
  %v125 = vld [vmem:[%s4 + $0x10] sm:$0xff]
  %v126 = vld [vmem:[%s4 + $0x18] sm:$0xff]
  %v127 = vld [vmem:[%s4 + $0x20] sm:$0xff]
  %v128 = vld [vmem:[%s4 + $0x28] sm:$0xff]
  %v129 = vld [vmem:[%s4 + $0x30] sm:$0xff]
  %v130 = vld [vmem:[%s4 + $0x38] sm:$0xff]
  %v131 = vld [vmem:[%s4 + $0x40] sm:$0xff]
  %v132 = vld [vmem:[%s4 + $0x48] sm:$0xff]
  %v133 = vld [vmem:[%s4 + $0x50] sm:$0xff]
  %v134 = vld [vmem:[%s4 + $0x58] sm:$0xff]
  %v135 = vld [vmem:[%s4 + $0x60] sm:$0xff]
  %v136 = vld [vmem:[%s4 + $0x68] sm:$0xff]
  %v137 = vld [vmem:[%s4 + $0x70] sm:$0xff]
  %v138 = vld [vmem:[%s4 + $0x78] sm:$0xff]
  %v139 = vld [vmem:[%s4 + $0x80] sm:$0xff]
  %v140 = vld [vmem:[%s4 + $0x88] sm:$0xff]
  %v141 = vld [vmem:[%s4 + $0x90] sm:$0xff]
  %v142 = vld [vmem:[%s4 + $0x98] sm:$0xff]
  %v143 = vld [vmem:[%s4 + $0xa0] sm:$0xff]
  %v144 = vld [vmem:[%s4 + $0xa8] sm:$0xff]
  %v145 = vld [vmem:[%s4 + $0xb0] sm:$0xff]
  %v146 = vld [vmem:[%s4 + $0xb8] sm:$0xff]
  %v147 = vld [vmem:[%s4 + $0xc0] sm:$0xff]
  %v148 = vld [vmem:[%s4 + $0xc8] sm:$0xff]
  %v149 = vld [vmem:[%s4 + $0xd0] sm:$0xff]
  %v150 = vld [vmem:[%s4 + $0xd8] sm:$0xff]
  %v151 = vld [vmem:[%s4 + $0xe0] sm:$0xff]
  %v152 = vld [vmem:[%s4 + $0xe8] sm:$0xff]
  %v153 = vld [vmem:[%s4 + $0xf0] sm:$0xff]
  %v154 = vld [vmem:[%s4 + $0xf8] sm:$0xff]
  %v155 = vld [vmem:[%s4 + $0x100] sm:$0xff]
  %v156 = vld [vmem:[%s4 + $0x108] sm:$0xff]
  %v157 = vld [vmem:[%s4 + $0x110] sm:$0xff]
  %v158 = vld [vmem:[%s4 + $0x118] sm:$0xff]
  %v159 = vld [vmem:[%s4 + $0x120] sm:$0xff]
  %v160 = vld [vmem:[%s4 + $0x128] sm:$0xff]
  %v161 = vld [vmem:[%s4 + $0x130] sm:$0xff]
  %v162 = vld [vmem:[%s4 + $0x138] sm:$0xff]
  %v163 = vld [vmem:[%s4 + $0x140] sm:$0xff]
  %v164 = vld [vmem:[%s4 + $0x148] sm:$0xff]
  %v165 = vld [vmem:[%s4 + $0x150] sm:$0xff]
  %v166 = vld [vmem:[%s4 + $0x158] sm:$0xff]
  %v167 = vld [vmem:[%s4 + $0x160] sm:$0xff]
  %v168 = vld [vmem:[%s4 + $0x168] sm:$0xff]
  %v169 = vld [vmem:[%s4 + $0x170] sm:$0xff]
  %v170 = vld [vmem:[%s4 + $0x178] sm:$0xff]
  %v171 = vld [vmem:[%s5] sm:$0x7]
  %v173 = vlaneseq
  %v174 = vshrl.u32 %v173, 7
  %v175 = vsub.s32 0, %v174
  %v176 = vrot.slane %v171, %v175
  %v177 = vlaneseq
  %v178 = vshrl.u32 %v177, 7
  %v179 = vsub.s32 1, %v178
  %v180 = vrot.slane %v171, %v179
  %v181 = vlaneseq
  %v182 = vshrl.u32 %v181, 7
  %v183 = vsub.s32 2, %v182
  %v184 = vrot.slane %v171, %v183
  %188 = vmatprep.subr.mxu0 %v124
  %189 = vmatpush1.msra.mxu0 %v123
  %190 = vmatprep.subr.mxu0 %v127
  %191 = vmatpush1.msra.mxu0 %v126
  %192 = vmatprep.subr.mxu0 %v130
  %193 = vmatpush1.msra.mxu0 %v129
  %194 = vmatprep.subr.mxu0 %v133
  %195 = vmatpush1.msra.mxu0 %v132
  %196 = vmatprep.subr.mxu0 %v136
  %197 = vmatpush1.msra.mxu0 %v135
  %198 = vmatprep.subr.mxu0 %v139
  %199 = vmatpush1.msra.mxu0 %v138
  %200 = vmatprep.subr.mxu0 %v142
  %201 = vmatpush1.msra.mxu0 %v141
  %202 = vmatprep.subr.mxu0 %v145
  %203 = vmatpush1.msra.mxu0 %v144
  %204 = vmatprep.subr.mxu0 %v148
  %205 = vmatpush1.msra.mxu0 %v147
  %206 = vmatprep.subr.mxu0 %v151
  %207 = vmatpush1.msra.mxu0 %v150
  %208 = vmatprep.subr.mxu0 %v154
  %209 = vmatpush1.msra.mxu0 %v153
  %210 = vmatprep.subr.mxu0 %v157
  %211 = vmatpush1.msra.mxu0 %v156
  %212 = vmatprep.subr.mxu0 %v160
  %213 = vmatpush1.msra.mxu0 %v159
  %214 = vmatprep.subr.mxu0 %v163
  %215 = vmatpush1.msra.mxu0 %v162
  %216 = vmatprep.subr.mxu0 %v166
  %217 = vmatpush1.msra.mxu0 %v165
  %218 = vmatprep.subr.mxu0 %v169
  %219 = vmatpush1.msra.mxu0 %v168
  %220 = vmatprep.subr.mxu0 0.0
  %221 = vmatpush1.msra.mxu0 0.0
  %222 = vmatprep.subr.mxu0 0.0
  %223 = vmatpush1.msra.mxu0 0.0
  %224 = vmatprep.subr.mxu0 0.0
  %225 = vmatpush1.msra.mxu0 0.0
  %226 = vmatprep.subr.mxu0 0.0
  %227 = vmatpush1.msra.mxu0 0.0
  %228 = vmatprep.subr.mxu0 0.0
  %229 = vmatpush1.msra.mxu0 0.0
  %230 = vmatprep.subr.mxu0 0.0
  %231 = vmatpush1.msra.mxu0 0.0
  %232 = vmatprep.subr.mxu0 0.0
  %233 = vmatpush1.msra.mxu0 0.0
  %234 = vmatprep.subr.mxu0 0.0
  %235 = vmatpush1.msra.mxu0 0.0
  %236 = vmatprep.subr.mxu0 0.0
  %237 = vmatpush1.msra.mxu0 0.0
  %238 = vmatprep.subr.mxu0 0.0
  %239 = vmatpush1.msra.mxu0 0.0
  %240 = vmatprep.subr.mxu0 0.0
  %241 = vmatpush1.msra.mxu0 0.0
  %242 = vmatprep.subr.mxu0 0.0
  %243 = vmatpush1.msra.mxu0 0.0
  %244 = vmatprep.subr.mxu0 0.0
  %245 = vmatpush1.msra.mxu0 0.0
  %246 = vmatprep.subr.mxu0 0.0
  %247 = vmatpush1.msra.mxu0 0.0
  %248 = vmatprep.subr.mxu0 0.0
  %249 = vmatpush1.msra.mxu0 0.0
  %250 = vmatprep.subr.mxu0 0.0
  %251 = vmatpush1.msra.mxu0 0.0
  %252 = vmatprep.mubr.f32.mxu0 0.0
  %253 = vmatmul.mubr.f32.gmra.mrb[0].mxu0 %v122
  %v254 = vpop.f32.mrb[0].mxu0
  %v255 = vadd.f32 %v176, %v254
  %v256 = vpop.f32.mrb[0].mxu0
  %v257 = vadd.f32 %v180, %v256
  %258 = vdwg.mxu0
  %259 = vmatprep.subr.mxu0 0.0
  %260 = vmatpush1.msra.mxu0 %v125
  %261 = vmatprep.subr.mxu0 0.0
  %262 = vmatpush1.msra.mxu0 %v128
  %263 = vmatprep.subr.mxu0 0.0
  %264 = vmatpush1.msra.mxu0 %v131
  %265 = vmatprep.subr.mxu0 0.0
  %266 = vmatpush1.msra.mxu0 %v134
  %267 = vmatprep.subr.mxu0 0.0
  %268 = vmatpush1.msra.mxu0 %v137
  %269 = vmatprep.subr.mxu0 0.0
  %270 = vmatpush1.msra.mxu0 %v140
  %271 = vmatprep.subr.mxu0 0.0
  %272 = vmatpush1.msra.mxu0 %v143
  %273 = vmatprep.subr.mxu0 0.0
  %274 = vmatpush1.msra.mxu0 %v146
  %275 = vmatprep.subr.mxu0 0.0
  %276 = vmatpush1.msra.mxu0 %v149
  %277 = vmatprep.subr.mxu0 0.0
  %278 = vmatpush1.msra.mxu0 %v152
  %279 = vmatprep.subr.mxu0 0.0
  %280 = vmatpush1.msra.mxu0 %v155
  %281 = vmatprep.subr.mxu0 0.0
  %282 = vmatpush1.msra.mxu0 %v158
  %283 = vmatprep.subr.mxu0 0.0
  %284 = vmatpush1.msra.mxu0 %v161
  %285 = vmatprep.subr.mxu0 0.0
  %286 = vmatpush1.msra.mxu0 %v164
  %287 = vmatprep.subr.mxu0 0.0
  %288 = vmatpush1.msra.mxu0 %v167
  %289 = vmatprep.subr.mxu0 0.0
  %290 = vmatpush1.msra.mxu0 %v170
  %291 = vmatprep.subr.mxu0 0.0
  %292 = vmatpush1.msra.mxu0 0.0
  %293 = vmatprep.subr.mxu0 0.0
  %294 = vmatpush1.msra.mxu0 0.0
  %295 = vmatprep.subr.mxu0 0.0
  %296 = vmatpush1.msra.mxu0 0.0
  %297 = vmatprep.subr.mxu0 0.0
  %298 = vmatpush1.msra.mxu0 0.0
  %299 = vmatprep.subr.mxu0 0.0
  %300 = vmatpush1.msra.mxu0 0.0
  %301 = vmatprep.subr.mxu0 0.0
  %302 = vmatpush1.msra.mxu0 0.0
  %303 = vmatprep.subr.mxu0 0.0
  %304 = vmatpush1.msra.mxu0 0.0
  %305 = vmatprep.subr.mxu0 0.0
  %306 = vmatpush1.msra.mxu0 0.0
  %307 = vmatprep.subr.mxu0 0.0
  %308 = vmatpush1.msra.mxu0 0.0
  %309 = vmatprep.subr.mxu0 0.0
  %310 = vmatpush1.msra.mxu0 0.0
  %311 = vmatprep.subr.mxu0 0.0
  %312 = vmatpush1.msra.mxu0 0.0
  %313 = vmatprep.subr.mxu0 0.0
  %314 = vmatpush1.msra.mxu0 0.0
  %315 = vmatprep.subr.mxu0 0.0
  %316 = vmatpush1.msra.mxu0 0.0
  %317 = vmatprep.subr.mxu0 0.0
  %318 = vmatpush1.msra.mxu0 0.0
  %319 = vmatprep.subr.mxu0 0.0
  %320 = vmatpush1.msra.mxu0 0.0
  %321 = vmatprep.subr.mxu0 0.0
  %322 = vmatpush1.msra.mxu0 0.0
  %323 = vmatprep.mubr.f32.mxu0 0.0
  %324 = vmatmul.mubr.f32.gmra.mrb[0].mxu0 %v122
  %v325 = vpop.f32.mrb[0].mxu0
  %v326 = vadd.f32 %v184, %v325
  %v327 = vpop.f32.mrb[0].mxu0
  %328 = vdwg.mxu0
  %v329 = vmax.f32 %v255, 0.0
  %v330 = vmax.f32 %v257, 0.0
  %v331 = vmax.f32 %v326, 0.0
  %v332 = vmin.f32 %v255, 0.0
  %v333 = vmin.f32 %v257, 0.0
  %v334 = vmin.f32 %v326, 0.0
  %v335 = vmul.f32 %v120, %v332
  %v336 = vmul.f32 %v120, %v333
  %v337 = vmul.f32 %v120, %v334
  %v338 = vadd.f32 %v329, %v335
  %v339 = vadd.f32 %v330, %v336
  %v340 = vadd.f32 %v331, %v337
  %v341 = vld [vmem:[%s6] sm:$0xff]
  %v342 = vld [vmem:[%s6 + $0x8] sm:$0xff]
  %v343 = vld [vmem:[%s6 + $0x10] sm:$0xff]
  %v344 = vld [vmem:[%s6 + $0x18] sm:$0xff]
  %v345 = vld [vmem:[%s6 + $0x20] sm:$0xff]
  %v346 = vld [vmem:[%s6 + $0x28] sm:$0xff]
  %v347 = vld [vmem:[%s6 + $0x30] sm:$0xff]
  %v348 = vld [vmem:[%s6 + $0x38] sm:$0xff]
  %v349 = vld [vmem:[%s6 + $0x40] sm:$0xff]
  %v350 = vld [vmem:[%s6 + $0x48] sm:$0xff]
  %v351 = vld [vmem:[%s6 + $0x50] sm:$0xff]
  %v352 = vld [vmem:[%s6 + $0x58] sm:$0xff]
  %v353 = vld [vmem:[%s6 + $0x60] sm:$0xff]
  %v354 = vld [vmem:[%s6 + $0x68] sm:$0xff]
  %v355 = vld [vmem:[%s6 + $0x70] sm:$0xff]
  %v356 = vld [vmem:[%s6 + $0x78] sm:$0xff]
  %v357 = vld [vmem:[%s6 + $0x80] sm:$0xff]
  %v358 = vld [vmem:[%s6 + $0x88] sm:$0xff]
  %v359 = vld [vmem:[%s6 + $0x90] sm:$0xff]
  %v360 = vld [vmem:[%s6 + $0x98] sm:$0xff]
  %v361 = vld [vmem:[%s6 + $0xa0] sm:$0xff]
  %v362 = vld [vmem:[%s6 + $0xa8] sm:$0xff]
  %v363 = vld [vmem:[%s6 + $0xb0] sm:$0xff]
  %v364 = vld [vmem:[%s6 + $0xb8] sm:$0xff]
  %v365 = vld [vmem:[%s6 + $0xc0] sm:$0xff]
  %v366 = vld [vmem:[%s6 + $0xc8] sm:$0xff]
  %v367 = vld [vmem:[%s6 + $0xd0] sm:$0xff]
  %v368 = vld [vmem:[%s6 + $0xd8] sm:$0xff]
  %v369 = vld [vmem:[%s6 + $0xe0] sm:$0xff]
  %v370 = vld [vmem:[%s6 + $0xe8] sm:$0xff]
  %v371 = vld [vmem:[%s6 + $0xf0] sm:$0xff]
  %v372 = vld [vmem:[%s6 + $0xf8] sm:$0xff]
  %v373 = vld [vmem:[%s6 + $0x100] sm:$0xff]
  %v374 = vld [vmem:[%s6 + $0x108] sm:$0xff]
  %v375 = vld [vmem:[%s6 + $0x110] sm:$0xff]
  %v376 = vld [vmem:[%s6 + $0x118] sm:$0xff]
  %v377 = vld [vmem:[%s6 + $0x120] sm:$0xff]
  %v378 = vld [vmem:[%s6 + $0x128] sm:$0xff]
  %v379 = vld [vmem:[%s6 + $0x130] sm:$0xff]
  %v380 = vld [vmem:[%s6 + $0x138] sm:$0xff]
  %v381 = vld [vmem:[%s6 + $0x140] sm:$0xff]
  %v382 = vld [vmem:[%s6 + $0x148] sm:$0xff]
  %v383 = vld [vmem:[%s6 + $0x150] sm:$0xff]
  %v384 = vld [vmem:[%s6 + $0x158] sm:$0xff]
  %v385 = vld [vmem:[%s6 + $0x160] sm:$0xff]
  %v386 = vld [vmem:[%s6 + $0x168] sm:$0xff]
  %v387 = vld [vmem:[%s6 + $0x170] sm:$0xff]
  %v388 = vld [vmem:[%s6 + $0x178] sm:$0xff]
  %v389 = vld [vmem:[%s7] sm:$0x1]
  %v391 = vlaneseq
  %v392 = vshrl.u32 %v391, 7
  %v393 = vsub.s32 0, %v392
  %v394 = vrot.slane %v389, %v393
  %396 = vmatprep.subr.mxu0 0.0
  %397 = vmatpush1.msra.mxu0 %v341
  %398 = vmatprep.subr.mxu0 0.0
  %399 = vmatpush1.msra.mxu0 %v342
  %400 = vmatprep.subr.mxu0 0.0
  %401 = vmatpush1.msra.mxu0 %v343
  %402 = vmatprep.subr.mxu0 0.0
  %403 = vmatpush1.msra.mxu0 %v344
  %404 = vmatprep.subr.mxu0 0.0
  %405 = vmatpush1.msra.mxu0 %v345
  %406 = vmatprep.subr.mxu0 0.0
  %407 = vmatpush1.msra.mxu0 %v346
  %408 = vmatprep.subr.mxu0 0.0
  %409 = vmatpush1.msra.mxu0 %v347
  %410 = vmatprep.subr.mxu0 0.0
  %411 = vmatpush1.msra.mxu0 %v348
  %412 = vmatprep.subr.mxu0 0.0
  %413 = vmatpush1.msra.mxu0 %v349
  %414 = vmatprep.subr.mxu0 0.0
  %415 = vmatpush1.msra.mxu0 %v350
  %416 = vmatprep.subr.mxu0 0.0
  %417 = vmatpush1.msra.mxu0 %v351
  %418 = vmatprep.subr.mxu0 0.0
  %419 = vmatpush1.msra.mxu0 %v352
  %420 = vmatprep.subr.mxu0 0.0
  %421 = vmatpush1.msra.mxu0 %v353
  %422 = vmatprep.subr.mxu0 0.0
  %423 = vmatpush1.msra.mxu0 %v354
  %424 = vmatprep.subr.mxu0 0.0
  %425 = vmatpush1.msra.mxu0 %v355
  %426 = vmatprep.subr.mxu0 0.0
  %427 = vmatpush1.msra.mxu0 %v356
  %428 = vmatprep.subr.mxu0 0.0
  %429 = vmatpush1.msra.mxu0 %v357
  %430 = vmatprep.subr.mxu0 0.0
  %431 = vmatpush1.msra.mxu0 %v358
  %432 = vmatprep.subr.mxu0 0.0
  %433 = vmatpush1.msra.mxu0 %v359
  %434 = vmatprep.subr.mxu0 0.0
  %435 = vmatpush1.msra.mxu0 %v360
  %436 = vmatprep.subr.mxu0 0.0
  %437 = vmatpush1.msra.mxu0 %v361
  %438 = vmatprep.subr.mxu0 0.0
  %439 = vmatpush1.msra.mxu0 %v362
  %440 = vmatprep.subr.mxu0 0.0
  %441 = vmatpush1.msra.mxu0 %v363
  %442 = vmatprep.subr.mxu0 0.0
  %443 = vmatpush1.msra.mxu0 %v364
  %444 = vmatprep.subr.mxu0 0.0
  %445 = vmatpush1.msra.mxu0 %v365
  %446 = vmatprep.subr.mxu0 0.0
  %447 = vmatpush1.msra.mxu0 %v366
  %448 = vmatprep.subr.mxu0 0.0
  %449 = vmatpush1.msra.mxu0 %v367
  %450 = vmatprep.subr.mxu0 0.0
  %451 = vmatpush1.msra.mxu0 %v368
  %452 = vmatprep.subr.mxu0 0.0
  %453 = vmatpush1.msra.mxu0 %v369
  %454 = vmatprep.subr.mxu0 0.0
  %455 = vmatpush1.msra.mxu0 %v370
  %456 = vmatprep.subr.mxu0 0.0
  %457 = vmatpush1.msra.mxu0 %v371
  %458 = vmatprep.subr.mxu0 0.0
  %459 = vmatpush1.msra.mxu0 %v372
  %460 = vmatprep.mubr.f32.mxu0 %v339
  %461 = vmatmul.mubr.f32.gmra.mrb[0].mxu0 %v338
  %v462 = vpop.f32.mrb[0].mxu0
  %v463 = vadd.f32 %v394, %v462
  %v464 = vpop.f32.mrb[0].mxu0
  %465 = vdwg.mxu0
  %466 = vmatprep.subr.mxu0 0.0
  %467 = vmatpush1.msra.mxu0 %v373
  %468 = vmatprep.subr.mxu0 0.0
  %469 = vmatpush1.msra.mxu0 %v374
  %470 = vmatprep.subr.mxu0 0.0
  %471 = vmatpush1.msra.mxu0 %v375
  %472 = vmatprep.subr.mxu0 0.0
  %473 = vmatpush1.msra.mxu0 %v376
  %474 = vmatprep.subr.mxu0 0.0
  %475 = vmatpush1.msra.mxu0 %v377
  %476 = vmatprep.subr.mxu0 0.0
  %477 = vmatpush1.msra.mxu0 %v378
  %478 = vmatprep.subr.mxu0 0.0
  %479 = vmatpush1.msra.mxu0 %v379
  %480 = vmatprep.subr.mxu0 0.0
  %481 = vmatpush1.msra.mxu0 %v380
  %482 = vmatprep.subr.mxu0 0.0
  %483 = vmatpush1.msra.mxu0 %v381
  %484 = vmatprep.subr.mxu0 0.0
  %485 = vmatpush1.msra.mxu0 %v382
  %486 = vmatprep.subr.mxu0 0.0
  %487 = vmatpush1.msra.mxu0 %v383
  %488 = vmatprep.subr.mxu0 0.0
  %489 = vmatpush1.msra.mxu0 %v384
  %490 = vmatprep.subr.mxu0 0.0
  %491 = vmatpush1.msra.mxu0 %v385
  %492 = vmatprep.subr.mxu0 0.0
  %493 = vmatpush1.msra.mxu0 %v386
  %494 = vmatprep.subr.mxu0 0.0
  %495 = vmatpush1.msra.mxu0 %v387
  %496 = vmatprep.subr.mxu0 0.0
  %497 = vmatpush1.msra.mxu0 %v388
  %498 = vmatprep.subr.mxu0 0.0
  %499 = vmatpush1.msra.mxu0 0.0
  %500 = vmatprep.subr.mxu0 0.0
  %501 = vmatpush1.msra.mxu0 0.0
  %502 = vmatprep.subr.mxu0 0.0
  %503 = vmatpush1.msra.mxu0 0.0
  %504 = vmatprep.subr.mxu0 0.0
  %505 = vmatpush1.msra.mxu0 0.0
  %506 = vmatprep.subr.mxu0 0.0
  %507 = vmatpush1.msra.mxu0 0.0
  %508 = vmatprep.subr.mxu0 0.0
  %509 = vmatpush1.msra.mxu0 0.0
  %510 = vmatprep.subr.mxu0 0.0
  %511 = vmatpush1.msra.mxu0 0.0
  %512 = vmatprep.subr.mxu0 0.0
  %513 = vmatpush1.msra.mxu0 0.0
  %514 = vmatprep.subr.mxu0 0.0
  %515 = vmatpush1.msra.mxu0 0.0
  %516 = vmatprep.subr.mxu0 0.0
  %517 = vmatpush1.msra.mxu0 0.0
  %518 = vmatprep.subr.mxu0 0.0
  %519 = vmatpush1.msra.mxu0 0.0
  %520 = vmatprep.subr.mxu0 0.0
  %521 = vmatpush1.msra.mxu0 0.0
  %522 = vmatprep.subr.mxu0 0.0
  %523 = vmatpush1.msra.mxu0 0.0
  %524 = vmatprep.subr.mxu0 0.0
  %525 = vmatpush1.msra.mxu0 0.0
  %526 = vmatprep.subr.mxu0 0.0
  %527 = vmatpush1.msra.mxu0 0.0
  %528 = vmatprep.subr.mxu0 0.0
  %529 = vmatpush1.msra.mxu0 0.0
  %530 = vmatprep.mubr.f32.mxu0 0.0
  %531 = vmatmul.mubr.f32.gmra.mrb[0].mxu0 %v340
  %v532 = vpop.f32.mrb[0].mxu0
  %v533 = vadd.f32 %v463, %v532
  %v534 = vpop.f32.mrb[0].mxu0
  %535 = vdwg.mxu0
  %536 = vst.msk [vmem:[%s8] sm:$0xff] %vm40, %v533
  // Predicated region
  $region34: #{tpu_custom_call.1} parent=0 // pred_check
    _
  $region35: #{tpu_custom_call.1} parent=0 // pred_check_branch
    %538 = sbr.rel (0) target = $region37
  $region36: #{tpu_custom_call.1} parent=0 // pred_region
    _
  $region37: #{tpu_custom_call.1} parent=0 // pred_fallthru
    _
  // Predicated region
  $region38: #{tpu_custom_call.1} parent=0 // pred_check
    _
  $region39: #{tpu_custom_call.1} parent=0 // pred_check_branch
    %540 = sbr.rel (0) target = $region41
  $region40: #{tpu_custom_call.1} parent=0 // pred_region
    _
  $region41: #{tpu_custom_call.1} parent=0 // pred_fallthru
    _

</llo_original>
